<compile_context>
chip_gen: v5e
topology: v5e:2x2
jax: 0.10.0
libtpu: 0.0.40
codegen_flags: <defaults>
</compile_context>

<pallas_src>
import functools

import numpy as np
import jax
import jax.numpy as jnp
from jax import lax
from jax.experimental import pallas as pl
from jax.experimental.pallas import tpu as pltpu

EPS = 1e-10


def _contrib_kernel(comp_ref, v_ref, out_ref, *, margin, delta):
    """Per-(batch, chunk) hinge contributions, lane-dense over comparisons."""
    comp = comp_ref[0]          # (6, C) f32: rows = [x1, y1, x2, y2, darker, weight]
    img = v_ref[0, 0]           # (H, W) f32
    H, W = img.shape
    C = comp.shape[1]

    x1 = comp[0:1, :].astype(jnp.int32)        # (1, C) integer compares
    y1 = comp[1:2, :].astype(jnp.int32)
    x2 = comp[2:3, :].astype(jnp.int32)
    y2 = comp[3:4, :].astype(jnp.int32)
    darker = comp[4:5, :].astype(jnp.int32)
    weight = comp[5:6, :]

    # Fused gather of r1 = img[y1, x1] and r2 = img[y2, x2]:
    #   cols[h, m] = img[h, x_m]   via one (H, W) x (W, 2C) MXU matmul
    #   r[m]       = cols[y_m, m]  via a masked sublane reduce
    # Iotas stay inline: hoisting into scratch under pl.when(first step) is
    # unsafe with both grid axes "parallel" (megacore), and they are cheap VPU
    # filler next to the MXU gather.
    x12 = jnp.concatenate([x1, x2], axis=1)                  # (1, 2C)
    y12 = jnp.concatenate([y1, y2], axis=1)                  # (1, 2C)
    iota_w = lax.broadcasted_iota(jnp.int32, (W, 2 * C), 0)
    iota_h = lax.broadcasted_iota(jnp.int32, (H, 2 * C), 0)
    oh_x = (iota_w == x12).astype(jnp.bfloat16)              # (W, 2C): 0/1 exact in bf16

    # Exact two-term bf16 split of the image: hi = bf16(img), lo = bf16(img - hi).
    # Each one-hot column selects a single product, so both bf16 MXU passes are
    # exact; cols == f32(hi) + f32(lo) ~ img to ~2^-17 relative error.  This also
    # pins the effective matmul precision explicitly (independent of the default
    # f32-dot decomposition).
    img_hi = img.astype(jnp.bfloat16)
    img_lo = (img - img_hi.astype(jnp.float32)).astype(jnp.bfloat16)
    cols = (jnp.dot(img_hi, oh_x, preferred_element_type=jnp.float32)
            + jnp.dot(img_lo, oh_x, preferred_element_type=jnp.float32))        # (H, 2C)
    r12 = jnp.sum(jnp.where(iota_h == y12, cols, 0.0), axis=0, keepdims=True)   # (1, 2C)
    r1 = r12[:, :C]                                          # C is a multiple of 128
    r2 = r12[:, C:]
    ratio = r1 / (r2 + EPS)                                  # (1, C)

    b_dark = 1.0 / (1.0 + delta + margin)    # darker == 1
    b_light = 1.0 + delta + margin           # darker == 2
    b_right = 1.0 + delta - margin           # darker == 0 (requires margin <= delta)
    b_left = 1.0 / b_right

    h1 = jnp.maximum(ratio - b_dark, 0.0)
    h2 = jnp.maximum(b_light - ratio, 0.0)
    h0 = jnp.maximum(ratio - b_right, 0.0) + jnp.maximum(b_left - ratio, 0.0)
    # TODO(synk): the PyTorch darker==0 branch with margin > delta references an
    # undefined variable `y` (broken upstream); only margin <= delta is supported.
    hinge = jnp.where(darker == 1, h1, jnp.where(darker == 2, h2, h0))
    out_ref[...] = (weight * hinge)[None]    # (1, 1, C) lane-dense output


def _recurrence_kernel(numc_ref, w_ref, c_ref, out_ref, *, n_comp):
    """Exact WHDR recurrence, lane-vectorized across the batch.

    numc_ref: (1, N) int32; w_ref / c_ref: (Mp, N) f32 (batch on lanes);
    out_ref: (1, N) f32 per-batch totals.
    """
    numc = numc_ref[...]                                    # (1, N)
    n_lanes = w_ref.shape[1]
    zeros = jnp.zeros((1, n_lanes), jnp.float32)

    def body(i, carry):
        loss, tw, total = carry
        active = i < numc                                   # (1, N) bool, per-lane mask
        w = jnp.where(active, w_ref[pl.ds(i, 1), :], 0.0)
        c = jnp.where(active, c_ref[pl.ds(i, 1), :], 0.0)
        tw = tw + w
        denom = jnp.where(active, tw, 1.0)                  # keep EXACT divide (no approx recip)
        loss = jnp.where(active, (loss + c) / denom, loss)  # PyTorch re-divides every step
        total = total + jnp.where(active, loss, 0.0)
        return loss, tw, total

    _, _, total = lax.fori_loop(0, n_comp, body, (zeros, zeros, zeros))
    out_ref[...] = total


def whdr_hinge_loss(v_input, comparisons, num_comparisons, margin=0.05, delta=0.1,
                    max_chunk=512):
    n, c, h, w = v_input.shape
    assert c == 1
    _, m, six = comparisons.shape
    assert six == 6
    assert margin <= delta, "darker==0 with margin > delta is broken upstream"

    # Lane-dense chunking of the comparison axis.  chunk <= 512 bounds kernel-1
    # intermediates (oh_x / cols / iotas scale with the chunk) to ~15 MiB even
    # at H = W = 512: fits v5e's 16 MiB scoped default and v7x's 64 MiB VMEM.
    chunk = min(int(max_chunk), ((m + 127) // 128) * 128)
    chunk = max(chunk, 128)
    mp = ((m + chunk - 1) // chunk) * chunk
    num_chunks = mp // chunk

    comp = comparisons.astype(jnp.float32)
    if mp != m:
        comp = jnp.pad(comp, ((0, 0), (0, mp - m), (0, 0)))
    comp_t = jnp.transpose(comp, (0, 2, 1))        # (N, 6, Mp): comparisons on lanes
    numc = num_comparisons.astype(jnp.int32).reshape(1, n)

    # Kernel 1: lane-dense per-comparison contributions weight * hinge(ratio).
    contrib = pl.pallas_call(
        functools.partial(_contrib_kernel, margin=float(margin), delta=float(delta)),
        out_shape=jax.ShapeDtypeStruct((n, 1, mp), jnp.float32),
        grid=(n, num_chunks),
        in_specs=[
            pl.BlockSpec((1, 6, chunk), lambda b, mc: (b, 0, mc)),
            # index_map ignores the chunk axis -> the (H, W) image block stays
            # VMEM-resident across all chunks of a batch (no re-DMA per chunk).
            pl.BlockSpec((1, 1, h, w), lambda b, mc: (b, 0, 0, 0)),
        ],
        out_specs=pl.BlockSpec((1, 1, chunk), lambda b, mc: (b, 0, mc)),
        compiler_params=pltpu.CompilerParams(
            dimension_semantics=("parallel", "parallel"),
            vmem_limit_bytes=32 * 1024 * 1024),
    )(comp_t, v_input.astype(jnp.float32))

    # Kernel 2: exact sequential recurrence with the batch on the lane axis
    # (serial depth M instead of N*M) over VMEM-resident tables (no SMEM).
    weights_t = jnp.transpose(comp_t[:, 5, :], (1, 0))           # (Mp, N)
    contrib_t = jnp.transpose(contrib.reshape(n, mp), (1, 0))    # (Mp, N)
    totals = pl.pallas_call(
        functools.partial(_recurrence_kernel, n_comp=m),
        out_shape=jax.ShapeDtypeStruct((1, n), jnp.float32),
        in_specs=[pl.BlockSpec(memory_space=pltpu.MemorySpace.VMEM)] * 3,
        out_specs=pl.BlockSpec(memory_space=pltpu.MemorySpace.VMEM),
    )(numc, weights_t, contrib_t)

    return (jnp.sum(totals) / n).reshape(1)   # PyTorch returns a (1,)-shaped tensor


def ref_whdr(v, comps, numc, margin=0.05, delta=0.1):
    """Pure-numpy mirror of the PyTorch forward (including its quirks)."""
    v = np.asarray(v, np.float64)
    comps = np.asarray(comps, np.float64)
    numc = np.asarray(numc)
    total = 0.0
    n = v.shape[0]
    for b in range(n):
        loss = 0.0
        tw = 0.0
        for i in range(int(numc[b])):
            x1, y1, x2, y2, darker, wgt = comps[b, i]
            x1, y1, x2, y2 = int(x1), int(y1), int(x2), int(y2)
            tw += wgt
            r1 = v[b, 0, y1, x1]
            r2 = v[b, 0, y2, x2]
            ratio = r1 / (r2 + EPS)
            if darker == 1:
                border = 1.0 / (1.0 + delta + margin)
                if ratio > border:
                    loss = loss + wgt * (ratio - border)
            elif darker == 2:
                border = 1.0 + delta + margin
                if ratio < border:
                    loss = loss + wgt * (border - ratio)
            else:
                br = 1.0 + delta - margin
                if ratio > br:
                    loss = loss + wgt * (ratio - br)
                elif ratio < 1.0 / br:
                    loss = loss + wgt * (1.0 / br - ratio)
            loss = loss / tw
            total += loss
    return total / n


if __name__ == "__main__":
    key = jax.random.PRNGKey(0)
    N, H, W, M = 2, 16, 16, 8
    k1, k2, k3, k4, k5 = jax.random.split(key, 5)

    v_input = jax.random.uniform(k1, (N, 1, H, W), jnp.float32, 0.1, 1.0)
    xy1 = jax.random.randint(k2, (N, M, 2), 0, W)        # x1, y1
    xy2 = jax.random.randint(k3, (N, M, 2), 0, W)        # x2, y2
    darker = jax.random.randint(k4, (N, M, 1), 0, 3)     # {0, 1, 2}
    weight = jax.random.uniform(k5, (N, M, 1), jnp.float32, 0.5, 1.5)
    comparisons = jnp.concatenate(
        [xy1.astype(jnp.float32), xy2.astype(jnp.float32),
         darker.astype(jnp.float32), weight], axis=-1)   # (N, M, 6)
    num_comparisons = jnp.array([5, M], dtype=jnp.int32)

    out = whdr_hinge_loss(v_input, comparisons, num_comparisons)
    out = jax.block_until_ready(out)

    ref = ref_whdr(np.asarray(v_input), np.asarray(comparisons),
                   np.asarray(num_comparisons))
    assert np.allclose(np.asarray(out)[0], ref, rtol=2e-4, atol=1e-5), (out, ref)
    print("KERNEL_OK")
</pallas_src>

<mosaic_0001>
module attributes {stable_mosaic.version = 11 : i64} {
  func.func @_contrib_kernel(%arg0: i32, %arg1: i32, %arg2: memref<1x6x128xf32, #tpu.memory_space<vmem>>, %arg3: memref<1x1x16x16xf32, #tpu.memory_space<vmem>>, %arg4: memref<1x1x128xf32, #tpu.memory_space<vmem>>) attributes {dimension_semantics = [#tpu.dimension_semantics<parallel>, #tpu.dimension_semantics<parallel>], iteration_bounds = array<i64: 2, 1>, scalar_prefetch = 0 : i64, scratch_operands = 0 : i64, tpu.core_type = #tpu.core_type<tc>, window_params = [{transform_indices = @transform_0, window_bounds = array<i64: 1, 6, 128>}, {transform_indices = @transform_1, window_bounds = array<i64: 1, 1, 16, 16>}, {transform_indices = @transform_2, window_bounds = array<i64: 1, 1, 128>}]} {
    %c0 = arith.constant 0 : index
    %c0_0 = arith.constant 0 : index
    %c0_1 = arith.constant 0 : index
    %0 = vector.load %arg2[%c0, %c0_0, %c0_1] : memref<1x6x128xf32, #tpu.memory_space<vmem>>, vector<1x6x128xf32>
    %1 = vector.shape_cast %0 : vector<1x6x128xf32> to vector<6x128xf32>
    %c0_2 = arith.constant 0 : index
    %c0_3 = arith.constant 0 : index
    %c0_4 = arith.constant 0 : index
    %c0_5 = arith.constant 0 : index
    %2 = vector.load %arg3[%c0_2, %c0_3, %c0_4, %c0_5] : memref<1x1x16x16xf32, #tpu.memory_space<vmem>>, vector<1x1x16x16xf32>
    %3 = vector.shape_cast %2 : vector<1x1x16x16xf32> to vector<16x16xf32>
    %4 = vector.extract_strided_slice %1 {offsets = [0, 0], sizes = [1, 128], strides = [1, 1]} : vector<6x128xf32> to vector<1x128xf32>
    %5 = arith.fptosi %4 : vector<1x128xf32> to vector<1x128xi32>
    %6 = vector.extract_strided_slice %1 {offsets = [1, 0], sizes = [1, 128], strides = [1, 1]} : vector<6x128xf32> to vector<1x128xf32>
    %7 = arith.fptosi %6 : vector<1x128xf32> to vector<1x128xi32>
    %8 = vector.extract_strided_slice %1 {offsets = [2, 0], sizes = [1, 128], strides = [1, 1]} : vector<6x128xf32> to vector<1x128xf32>
    %9 = arith.fptosi %8 : vector<1x128xf32> to vector<1x128xi32>
    %10 = vector.extract_strided_slice %1 {offsets = [3, 0], sizes = [1, 128], strides = [1, 1]} : vector<6x128xf32> to vector<1x128xf32>
    %11 = arith.fptosi %10 : vector<1x128xf32> to vector<1x128xi32>
    %12 = vector.extract_strided_slice %1 {offsets = [4, 0], sizes = [1, 128], strides = [1, 1]} : vector<6x128xf32> to vector<1x128xf32>
    %13 = arith.fptosi %12 : vector<1x128xf32> to vector<1x128xi32>
    %14 = vector.extract_strided_slice %1 {offsets = [5, 0], sizes = [1, 128], strides = [1, 1]} : vector<6x128xf32> to vector<1x128xf32>
    %15 = tpu.concatenate %5, %9 in 1 : vector<1x128xi32>, vector<1x128xi32> -> vector<1x256xi32>
    %16 = tpu.concatenate %7, %11 in 1 : vector<1x128xi32>, vector<1x128xi32> -> vector<1x256xi32>
    %17 = tpu.iota {dimensions = array<i32: 0>} : vector<16x256xi32>
    %18 = tpu.iota {dimensions = array<i32: 0>} : vector<16x256xi32>
    %19 = vector.broadcast %15 : vector<1x256xi32> to vector<16x256xi32>
    %20 = arith.cmpi eq, %17, %19 : vector<16x256xi32>
    %21 = arith.extui %20 : vector<16x256xi1> to vector<16x256xi32>
    %22 = arith.sitofp %21 : vector<16x256xi32> to vector<16x256xf32>
    %23 = arith.truncf %22 : vector<16x256xf32> to vector<16x256xbf16>
    %24 = arith.truncf %3 : vector<16x16xf32> to vector<16x16xbf16>
    %25 = arith.extf %24 : vector<16x16xbf16> to vector<16x16xf32>
    %26 = arith.subf %3, %25 : vector<16x16xf32>
    %27 = arith.truncf %26 : vector<16x16xf32> to vector<16x16xbf16>
    %cst = arith.constant dense<0.000000e+00> : vector<16x256xf32>
    %28 = tpu.matmul %24, %23, %cst {dimension_numbers = #tpu.dot_dimension_numbers<[1], [0], [0], [1], [0, 0, 1, 1], [], []>} : vector<16x16xbf16>, vector<16x256xbf16>, vector<16x256xf32> -> vector<16x256xf32>
    %cst_6 = arith.constant dense<0.000000e+00> : vector<16x256xf32>
    %29 = tpu.matmul %27, %23, %cst_6 {dimension_numbers = #tpu.dot_dimension_numbers<[1], [0], [0], [1], [0, 0, 1, 1], [], []>} : vector<16x16xbf16>, vector<16x256xbf16>, vector<16x256xf32> -> vector<16x256xf32>
    %30 = arith.addf %28, %29 : vector<16x256xf32>
    %31 = vector.broadcast %16 : vector<1x256xi32> to vector<16x256xi32>
    %32 = arith.cmpi eq, %18, %31 : vector<16x256xi32>
    %cst_7 = arith.constant 0.000000e+00 : f32
    %33 = vector.broadcast %cst_7 : f32 to vector<16x256xf32>
    %34 = arith.select %32, %30, %33 : vector<16x256xi1>, vector<16x256xf32>
    %cst_8 = arith.constant dense<0.000000e+00> : vector<256xf32>
    %35 = vector.multi_reduction <add>, %34, %cst_8 [0] : vector<16x256xf32> to vector<256xf32>
    %36 = vector.shape_cast %35 : vector<256xf32> to vector<1x256xf32>
    %37 = vector.extract_strided_slice %36 {offsets = [0, 0], sizes = [1, 128], strides = [1, 1]} : vector<1x256xf32> to vector<1x128xf32>
    %38 = vector.extract_strided_slice %36 {offsets = [0, 128], sizes = [1, 128], strides = [1, 1]} : vector<1x256xf32> to vector<1x128xf32>
    %cst_9 = arith.constant 1.000000e-10 : f32
    %39 = vector.broadcast %cst_9 : f32 to vector<1x128xf32>
    %40 = arith.addf %38, %39 : vector<1x128xf32>
    %41 = arith.divf %37, %40 : vector<1x128xf32>
    %cst_10 = arith.constant 0.869565188 : f32
    %42 = vector.broadcast %cst_10 : f32 to vector<1x128xf32>
    %43 = arith.subf %41, %42 : vector<1x128xf32>
    %cst_11 = arith.constant 0.000000e+00 : f32
    %44 = vector.broadcast %cst_11 : f32 to vector<1x128xf32>
    %45 = arith.maximumf %43, %44 : vector<1x128xf32>
    %cst_12 = arith.constant 1.150000e+00 : f32
    %46 = vector.broadcast %cst_12 : f32 to vector<1x128xf32>
    %47 = arith.subf %46, %41 : vector<1x128xf32>
    %cst_13 = arith.constant 0.000000e+00 : f32
    %48 = vector.broadcast %cst_13 : f32 to vector<1x128xf32>
    %49 = arith.maximumf %47, %48 : vector<1x128xf32>
    %cst_14 = arith.constant 1.050000e+00 : f32
    %50 = vector.broadcast %cst_14 : f32 to vector<1x128xf32>
    %51 = arith.subf %41, %50 : vector<1x128xf32>
    %cst_15 = arith.constant 0.000000e+00 : f32
    %52 = vector.broadcast %cst_15 : f32 to vector<1x128xf32>
    %53 = arith.maximumf %51, %52 : vector<1x128xf32>
    %cst_16 = arith.constant 0.952380955 : f32
    %54 = vector.broadcast %cst_16 : f32 to vector<1x128xf32>
    %55 = arith.subf %54, %41 : vector<1x128xf32>
    %cst_17 = arith.constant 0.000000e+00 : f32
    %56 = vector.broadcast %cst_17 : f32 to vector<1x128xf32>
    %57 = arith.maximumf %55, %56 : vector<1x128xf32>
    %58 = arith.addf %53, %57 : vector<1x128xf32>
    %c1_i32 = arith.constant 1 : i32
    %59 = vector.broadcast %c1_i32 : i32 to vector<1x128xi32>
    %60 = arith.cmpi eq, %13, %59 : vector<1x128xi32>
    %c2_i32 = arith.constant 2 : i32
    %61 = vector.broadcast %c2_i32 : i32 to vector<1x128xi32>
    %62 = arith.cmpi eq, %13, %61 : vector<1x128xi32>
    %63 = arith.select %62, %49, %58 : vector<1x128xi1>, vector<1x128xf32>
    %64 = arith.select %60, %45, %63 : vector<1x128xi1>, vector<1x128xf32>
    %65 = arith.mulf %14, %64 : vector<1x128xf32>
    %66 = vector.shape_cast %65 : vector<1x128xf32> to vector<1x1x128xf32>
    %c0_18 = arith.constant 0 : index
    %c0_19 = arith.constant 0 : index
    %c0_20 = arith.constant 0 : index
    %67 = vector.load %arg4[%c0_18, %c0_19, %c0_20] : memref<1x1x128xf32, #tpu.memory_space<vmem>>, vector<1x1x128xf32>
    tpu.vector_store %arg4[%c0_18, %c0_19, %c0_20], %66 {strides = array<i32>} : memref<1x1x128xf32, #tpu.memory_space<vmem>>, vector<1x1x128xf32>,
    return
  }
  func.func @transform_0(%arg0: i32, %arg1: i32) -> (i32, i32, i32) {
    %c0_i32 = arith.constant 0 : i32
    %c0_i32_0 = arith.constant 0 : i32
    return %arg0, %c0_i32, %arg1 : i32, i32, i32
  }
  func.func @transform_1(%arg0: i32, %arg1: i32) -> (i32, i32, i32, i32) {
    %c0_i32 = arith.constant 0 : i32
    %c0_i32_0 = arith.constant 0 : i32
    %c0_i32_1 = arith.constant 0 : i32
    %c0_i32_2 = arith.constant 0 : i32
    return %arg0, %c0_i32, %c0_i32_0, %c0_i32_1 : i32, i32, i32, i32
  }
  func.func @transform_2(%arg0: i32, %arg1: i32) -> (i32, i32, i32) {
    %c0_i32 = arith.constant 0 : i32
    %c0_i32_0 = arith.constant 0 : i32
    return %arg0, %c0_i32, %arg1 : i32, i32, i32
  }
}

</mosaic_0001>

<llo_original>
// kernel: tpu_custom_call.1
$region0: #{tpu_custom_call.1}
  #allocation0 [shape = 'u32[]', space=smem, size = 0x4, offset = 0x4, fixed_abs, tag = 'smem constant byte address 0x4 - core index']
  #allocation1 [shape = 'u32[72,128]{1,0:T(1,128)}', space=vmem, size = 0x9000, scoped, tag = 'internal scratch']
  %s0 = inlined_call_operand.vmem [shape: f32[2,6,128], index: 0, kind: input, shape index: {}]
  %s1 = inlined_call_operand.hbm [shape: f32[2,1,16,16], index: 1, kind: input, shape index: {}]
  %s2 = inlined_call_operand.hbm [shape: f32[2,1,128], index: 2, kind: output, shape index: {}]
  %s3 = sld [smem:[#allocation0]]
  $region45: #{tpu_custom_call.1} parent=0
    _
  %s5 = ssub.s32 1, %s3
  %s6 = scalar_select 0, %s5, %s3
  $region1: #{tpu_custom_call.1} parent=0
    #allocation2 [shape = 'u8[16384]{0}', space=vmem, size = 0x4000, scoped, tag = 'input window, operand 1']
    #allocation3 [shape = 's32[2]{0}', space=sflag, size = 0x8, scoped, tag = 'scoped memory for tpu_custom_call.1']
    #allocation4 [shape = 's32[2]{0}', space=sflag, size = 0x8, scoped, tag = 'scoped memory for tpu_custom_call.1']
    #allocation5 [shape = 'u8[1024]{0}', space=vmem, size = 0x400, scoped, tag = 'output window, operand 0']
    %7 = vsyncpa [#allocation3], 0
    %s8 = scalar_lea.sflag [#allocation3], 1
    %9 = vsyncpa %s8, 0
    %10 = vsyncpa [#allocation4], 0
    %s11 = scalar_lea.sflag [#allocation4], 1
    %12 = vsyncpa %s11, 0
    loop: start=0, step=1, limit=4
    $region2: #{tpu_custom_call.1} parent=1 // loop_pre_header
      _
    $region3: #{tpu_custom_call.1} parent=1 // loop_header
      %s14 = sphi 0, %s18
      %p15 = scmp.ge.s32.totalorder %s14, 4
      %s21 = sphi 0, %s33
      %s22 = sphi 0, %s29
      %s23 = sphi 0, %s21
      %s24 = sphi 0, %s22
      %s25 = sphi 0, %s23
      %s26 = sphi 0, %s24
      %s38 = sphi 0, %s40
      %s41 = sphi 0, %s38
      %s42 = sphi 0, %s41
      %s58 = sphi 0, %s42
      %s64 = sphi 0, %s66
      %s67 = sphi 0, %s64
      %s68 = sphi 0, %s67
      %s84 = sphi 0, %s68
      %s92 = sphi 0, %s94
      %s95 = sphi 0, %s92
      %s96 = sphi 0, %s95
      %s112 = sphi 0, %s96
    $region4: #{tpu_custom_call.1} parent=1 // loop_header_branch
      %17 = sbr.rel (%p15) target = $region8
    $region5: #{tpu_custom_call.1} parent=1 // loop_body
      %s19 = ssub.s32 %s14, 1
      %s20 = ssub.s32 %s14, 2
      %s27 = sadd.s32 1, %s22
      %p28 = scmp.ge.s32.totalorder %s27, 1
      %s29 = scalar_select %p28, 0, %s27
      %s30 = sadd.s32 1, %s21
      %s31 = scalar_select %p28, %s30, %s21
      %p32 = scmp.ge.s32.totalorder %s31, 2
      %s33 = scalar_select %p32, 0, %s31
      %s34 = ssub.s32 %s21, %s33
      %s35 = ssub.s32 %s22, %s29
      %s36 = sor.u32 %s34, %s35
      %p37 = scmp.eq.s32.totalorder %s36, 0
      %s39 = sadd.s32 %s38, 1
      %s40 = scalar_select %p37, %s38, %s39
      %p43 = pneg %p37
      %p44 = scmp.eq.s32.totalorder %s14, 1
      %p45 = por %p43, %p44
      %p46 = scmp.ne.s32.totalorder %s38, %s41
      %p47 = scmp.eq.s32.totalorder %s14, 0
      %p48 = por %p46, %p47
      %p49 = scmp.ne.s32.totalorder %s38, %s41
      %p50 = scmp.eq.s32.totalorder %s19, 1
      %p51 = por %p49, %p50
      %p52 = scmp.ne.s32.totalorder %s41, %s42
      %p53 = scmp.eq.s32.totalorder %s19, 0
      %p54 = por %p52, %p53
      %p55 = scmp.ne.s32.totalorder %s41, %s42
      %p56 = scmp.eq.s32.totalorder %s20, 1
      %p57 = por %p55, %p56
      %p59 = scmp.ne.s32.totalorder %s42, %s58
      %p60 = scmp.eq.s32.totalorder %s20, 0
      %p61 = por %p59, %p60
      %s62 = ssub.s32 %s21, %s33
      %p63 = scmp.eq.s32.totalorder %s62, 0
      %s65 = sadd.s32 %s64, 1
      %s66 = scalar_select %p63, %s64, %s65
      %p69 = pneg %p63
      %p70 = scmp.eq.s32.totalorder %s14, 1
      %p71 = por %p69, %p70
      %p72 = scmp.ne.s32.totalorder %s64, %s67
      %p73 = scmp.eq.s32.totalorder %s14, 0
      %p74 = por %p72, %p73
      %p75 = scmp.ne.s32.totalorder %s64, %s67
      %p76 = scmp.eq.s32.totalorder %s19, 1
      %p77 = por %p75, %p76
      %p78 = scmp.ne.s32.totalorder %s67, %s68
      %p79 = scmp.eq.s32.totalorder %s19, 0
      %p80 = por %p78, %p79
      %p81 = scmp.ne.s32.totalorder %s67, %s68
      %p82 = scmp.eq.s32.totalorder %s20, 1
      %p83 = por %p81, %p82
      %p85 = scmp.ne.s32.totalorder %s68, %s84
      %p86 = scmp.eq.s32.totalorder %s20, 0
      %p87 = por %p85, %p86
      %s88 = ssub.s32 %s21, %s33
      %s89 = ssub.s32 %s22, %s29
      %s90 = sor.u32 %s88, %s89
      %p91 = scmp.eq.s32.totalorder %s90, 0
      %s93 = sadd.s32 %s92, 1
      %s94 = scalar_select %p91, %s92, %s93
      %p97 = pneg %p91
      %p98 = scmp.eq.s32.totalorder %s14, 1
      %p99 = por %p97, %p98
      %p100 = scmp.ne.s32.totalorder %s92, %s95
      %p101 = scmp.eq.s32.totalorder %s14, 0
      %p102 = por %p100, %p101
      %p103 = scmp.ne.s32.totalorder %s92, %s95
      %p104 = scmp.eq.s32.totalorder %s19, 1
      %p105 = por %p103, %p104
      %p106 = scmp.ne.s32.totalorder %s95, %s96
      %p107 = scmp.eq.s32.totalorder %s19, 0
      %p108 = por %p106, %p107
      %p109 = scmp.ne.s32.totalorder %s95, %s96
      %p110 = scmp.eq.s32.totalorder %s20, 1
      %p111 = por %p109, %p110
      %p113 = scmp.ne.s32.totalorder %s96, %s112
      %p114 = scmp.eq.s32.totalorder %s20, 0
      %p115 = por %p113, %p114
      %p116 = scmp.le.s32.totalorder 1, %s14
      %p117 = scmp.lt.s32.totalorder %s14, 3
      %p118 = pnand %p116, %p117
      %p119 = pneg %p118
      // Predicated region
      $region9: #{tpu_custom_call.1} parent=5 // pred_check
        _
      $region10: #{tpu_custom_call.1} parent=5 // pred_check_branch
        %121 = sbr.rel (%p118) target = $region12
      $region11: #{tpu_custom_call.1} parent=5 // pred_region
        %s122 = ssub.s32 %s14, 1
      $region12: #{tpu_custom_call.1} parent=5 // pred_fallthru
        _
      %p123 = scmp.lt.s32.totalorder %s14, 2
      // Predicated region
      $region13: #{tpu_custom_call.1} parent=5 // pred_check
        %p124 = pneg %p123
      $region14: #{tpu_custom_call.1} parent=5 // pred_check_branch
        %126 = sbr.rel (%p124) target = $region16
      $region15: #{tpu_custom_call.1} parent=5 // pred_region
        // Predicated region
        $region17: #{tpu_custom_call.1} parent=15 // pred_check
          %p127 = pneg %p48
        $region18: #{tpu_custom_call.1} parent=15 // pred_check_branch
          %129 = sbr.rel (%p127) target = $region20
        $region19: #{tpu_custom_call.1} parent=15 // pred_region
          %p130 = scmp.lt.s32.totalorder %s21, 1
          %s131 = scalar_select %p130, %s21, 1
          %p132 = scmp.lt.s32.totalorder %s22, 0
          %s133 = scalar_select %p132, %s22, 0
          %s134 = sadd.s32 %s133, %s131
          %s135 = smul.addr %s134, 8
          %s136 = scalar_lea.vmem %s0, %s135
        $region20: #{tpu_custom_call.1} parent=15 // pred_fallthru
          _
        // Predicated region
        $region21: #{tpu_custom_call.1} parent=15 // pred_check
          %p137 = pneg %p74
        $region22: #{tpu_custom_call.1} parent=15 // pred_check_branch
          %139 = sbr.rel (%p137) target = $region24
        $region23: #{tpu_custom_call.1} parent=15 // pred_region
          %s140 = sand.u32 %s64, 1
          %s141 = scalar_lea.sflag [#allocation3], %s140
          %s142 = sand.u32 %s64, 1
          %s143 = smul.addr %s142, 16
          %s144 = scalar_lea.vmem [#allocation2], %s143
          %146 = vsyncadd %s141, 0
          %s147 = smul.addr %s21, 2
          %s148 = smul.addr %s147, 8
          %s149 = scalar_lea.hbm %s1, %s148
          %s150 = sshll.u32 %s149, 4
          %s151 = int_to_ptr.hbm [resolvable:$true] %s150
          %s152 = sshll.u32 %s144, 4
          %s153 = int_to_ptr.vmem [resolvable:$true] %s152
          %158 = dma.hbm_to_vmem [thread:$0]  %s151, 256, %s153, %s141, 128, 128, 8
        $region24: #{tpu_custom_call.1} parent=15 // pred_fallthru
          _
      $region16: #{tpu_custom_call.1} parent=5 // pred_fallthru
        _
      %p159 = scmp.le.s32.totalorder 1, %s14
      %p160 = scmp.lt.s32.totalorder %s14, 3
      %p161 = pnand %p159, %p160
      %p162 = pneg %p161
      // Predicated region
      $region25: #{tpu_custom_call.1} parent=5 // pred_check
        _
      $region26: #{tpu_custom_call.1} parent=5 // pred_check_branch
        %164 = sbr.rel (%p161) target = $region28
      $region27: #{tpu_custom_call.1} parent=5 // pred_region
        %s165 = ssub.s32 %s14, 1
        %s166 = sand.u32 %s67, 1
        %s167 = scalar_lea.sflag [#allocation3], %s166
        %s168 = sand.u32 %s67, 1
        %s169 = smul.addr %s168, 16
        %s170 = scalar_lea.vmem [#allocation2], %s169
        // Predicated region
        $region29: #{tpu_custom_call.1} parent=27 // pred_check
          %p171 = pneg %p80
        $region30: #{tpu_custom_call.1} parent=27 // pred_check_branch
          %173 = sbr.rel (%p171) target = $region32
        $region31: #{tpu_custom_call.1} parent=27 // pred_region
          %175 = dma.done %s167, 256
        $region32: #{tpu_custom_call.1} parent=27 // pred_fallthru
          _
        %p176 = scmp.lt.s32.totalorder %s23, 1
        %s177 = scalar_select %p176, %s23, 1
        %p178 = scmp.lt.s32.totalorder %s24, 0
        %s179 = scalar_select %p178, %s24, 0
        %s180 = sadd.s32 %s179, %s177
        %s181 = smul.addr %s180, 8
        %s182 = scalar_lea.vmem %s0, %s181
        %p183 = pneg %p54
        %p184 = pneg %p51
        %s185 = sand.u32 %s67, 1
        %s186 = scalar_lea.sflag [#allocation3], %s185
        %s187 = sand.u32 %s67, 1
        %s188 = smul.addr %s187, 16
        %s189 = scalar_lea.vmem [#allocation2], %s188
        %p190 = pneg %p80
        %p191 = pneg %p77
        %p192 = pneg %p108
        %p193 = pneg %p105
        %s194 = sand.u32 %s95, 1
        %s195 = scalar_lea.sflag [#allocation4], %s194
        %s196 = sand.u32 %s95, 1
        %s197 = scalar_lea.vmem [#allocation5], %s196
        %p198 = scmp.lt.s32.totalorder %s23, 1
        %s199 = scalar_select %p198, %s23, 1
        %p200 = scmp.lt.s32.totalorder %s24, 0
        %s201 = scalar_select %p200, %s24, 0
        %s202 = sadd.s32 %s201, %s199
        %s203 = smul.addr %s202, 8
        %s204 = scalar_lea.vmem %s0, %s203
        %v206 = vld [vmem:[%s204] sm:$0x3f]
        %v207 = vld [vmem:[%s170] sm:$0xff]
        %v208 = vld [vmem:[%s170 + $0x8] sm:$0xff]
        %v209 = vcvt.f32.s32.to.zero.pseudo %v206
        %v210 = vrot.slane %v209, 2
        %v211 = vlaneseq
        %v212 = vshrl.u32 %v211, 7
        %v213 = vadd.s32 %v212, 8
        %v214 = vperm.slane %v209, 0
        %v215 = vperm.slane %v210, 0
        %vm216 = vcmp.eq.s32.totalorder %v212, %v214
        %vm217 = vcmp.eq.s32.totalorder %v212, %v215
        %vm218 = vcmp.eq.s32.totalorder %v213, %v214
        %vm219 = vcmp.eq.s32.totalorder %v213, %v215
        %v220 = vsel %vm216, 1, 0
        %v221 = vsel %vm217, 1, 0
        %v222 = vsel %vm218, 1, 0
        %v223 = vsel %vm219, 1, 0
        %v224 = vcvt.s32.f32 %v220
        %v225 = vcvt.s32.f32 %v221
        %v226 = vcvt.s32.f32 %v222
        %v227 = vcvt.s32.f32 %v223
        %v228 = vpack.c.bf16 %v226, %v224
        %v229 = vpack.c.bf16 %v227, %v225
        %v230 = vpack.c.bf16 %v207, %v207
        %v231 = vpack.c.bf16 %v208, %v208
        %v232 = vunpack.c.l.bf16 %v230
        %v233 = vunpack.c.l.bf16 %v231
        %v234 = vsub.f32 %v207, %v232
        %v235 = vsub.f32 %v208, %v233
        %v236 = vpack.c.bf16 %v235, %v234
        %vm237 = vcmask 130048
        %v239 = vsel %vm237, %v236, 0
        %241 = vmatpush.bf16.msra.mxu0 0
        %242 = vmatpush.bf16.msra.mxu0 0
        %243 = vmatpush.bf16.msra.mxu0 0
        %244 = vmatpush.bf16.msra.mxu0 0
        %245 = vmatpush.bf16.msra.mxu0 0
        %246 = vmatpush.bf16.msra.mxu0 0
        %247 = vmatpush.bf16.msra.mxu0 0
        %248 = vmatpush.bf16.msra.mxu0 %v228
        %249 = vmatmul.bf16.gmra.mxu0 %v239
        %v250 = vpop.f32.mrf.mxu0
        %v251 = vadd.f32 0.0, %v250
        %v252 = vpop.f32.mrf.mxu0
        %v253 = vadd.f32 0.0, %v252
        %254 = vdwg.mxu0
        %255 = vmatpush.bf16.msra.mxu0 0
        %256 = vmatpush.bf16.msra.mxu0 0
        %257 = vmatpush.bf16.msra.mxu0 0
        %258 = vmatpush.bf16.msra.mxu0 0
        %259 = vmatpush.bf16.msra.mxu0 0
        %260 = vmatpush.bf16.msra.mxu0 0
        %261 = vmatpush.bf16.msra.mxu0 0
        %262 = vmatpush.bf16.msra.mxu0 %v229
        %263 = vmatmul.bf16.gmra.mxu0 %v239
        %v264 = vpop.f32.mrf.mxu0
        %v265 = vadd.f32 0.0, %v264
        %v266 = vpop.f32.mrf.mxu0
        %v267 = vadd.f32 0.0, %v266
        %268 = vdwg.mxu0
        %v271 = vunpack.c.l.b16 %v230
        %v272 = vunpack.c.l.b16 %v231
        %v273 = vpack.c.b16 %v272, %v271
        %v275 = vsel %vm237, %v273, 0
        %277 = vmatpush.bf16.msra.mxu0 0
        %278 = vmatpush.bf16.msra.mxu0 0
        %279 = vmatpush.bf16.msra.mxu0 0
        %280 = vmatpush.bf16.msra.mxu0 0
        %281 = vmatpush.bf16.msra.mxu0 0
        %282 = vmatpush.bf16.msra.mxu0 0
        %283 = vmatpush.bf16.msra.mxu0 0
        %284 = vmatpush.bf16.msra.mxu0 %v228
        %285 = vmatmul.bf16.gmra.mxu0 %v275
        %v286 = vpop.f32.mrf.mxu0
        %v287 = vadd.f32 %v251, %v286
        %v288 = vpop.f32.mrf.mxu0
        %v289 = vadd.f32 %v253, %v288
        %290 = vdwg.mxu0
        %291 = vmatpush.bf16.msra.mxu0 0
        %292 = vmatpush.bf16.msra.mxu0 0
        %293 = vmatpush.bf16.msra.mxu0 0
        %294 = vmatpush.bf16.msra.mxu0 0
        %295 = vmatpush.bf16.msra.mxu0 0
        %296 = vmatpush.bf16.msra.mxu0 0
        %297 = vmatpush.bf16.msra.mxu0 0
        %298 = vmatpush.bf16.msra.mxu0 %v229
        %299 = vmatmul.bf16.gmra.mxu0 %v275
        %v300 = vpop.f32.mrf.mxu0
        %v301 = vadd.f32 %v265, %v300
        %v302 = vpop.f32.mrf.mxu0
        %v303 = vadd.f32 %v267, %v302
        %304 = vdwg.mxu0
        %v305 = vperm.slane %v209, 1
        %v306 = vperm.slane %v210, 1
        %vm307 = vcmp.eq.s32.totalorder %v212, %v305
        %vm308 = vcmp.eq.s32.totalorder %v212, %v306
        %vm309 = vcmp.eq.s32.totalorder %v213, %v305
        %vm310 = vcmp.eq.s32.totalorder %v213, %v306
        %v311 = vsel %vm307, %v287, 0.0
        %v312 = vsel %vm308, %v301, 0.0
        %v313 = vsel %vm309, %v289, 0.0
        %v314 = vsel %vm310, %v303, 0.0
        %v315 = vadd.f32 %v311, %v313
        %v316 = vrot.slane %v315, 4
        %v317 = vadd.f32 %v315, %v316
        %v318 = vrot.slane %v317, 2
        %v319 = vadd.f32 %v317, %v318
        %v320 = vrot.slane %v319, 1
        %v321 = vadd.f32 %v319, %v320
        %v322 = vadd.f32 %v312, %v314
        %v323 = vrot.slane %v322, 4
        %v324 = vadd.f32 %v322, %v323
        %v325 = vrot.slane %v324, 2
        %v326 = vadd.f32 %v324, %v325
        %v327 = vrot.slane %v326, 1
        %v328 = vadd.f32 %v326, %v327
        %v329 = vadd.f32 %v328, 1e-10
        %v330 = vrcp.pop %v329
        %v331 = vmul.f32 %v329, %v330
        %v332 = vsub.f32 1.0, %v331
        %v333 = vmul.f32 %v330, %v332
        %v334 = vadd.f32 %v330, %v333
        %vm335 = vweird.f32 %v329
        %vm336 = vweird.f32 %v330
        %vm337 = vmor %vm335, %vm336
        %v338 = vsel %vm337, %v330, %v334
        %v339 = vand.u32 2147483647, %v329
        %vm340 = vcmp.eq.f32.partialorder %v339, 8.507059e+37
        %v341 = vand.u32 %v329, 2147483648
        %v342 = vor.u32 1.1754944e-38, %v341
        %v343 = vsel %vm340, %v342, %v338
        %v344 = vmul.f32 %v321, %v343
        %v345 = vsub.f32 %v344, 0.8695652
        %v346 = vmax.f32 %v345, 0.0
        %v347 = vsub.f32 1.15, %v344
        %v348 = vmax.f32 %v347, 0.0
        %v349 = vsub.f32 %v344, 1.05
        %v350 = vmax.f32 %v349, 0.0
        %v351 = vsub.f32 0.95238096, %v344
        %v352 = vmax.f32 %v351, 0.0
        %v353 = vadd.f32 %v350, %v352
        %vm354 = vcmp.eq.s32.totalorder %v209, 1
        %vm355 = vcmp.eq.s32.totalorder %v209, 2
        %v356 = vsel %vm355, %v348, %v353
        %v357 = vsel %vm354, %v346, %v356
        %v359 = vrot.slane %v357, 7
        %v361 = vmul.f32 %v206, %v359
        %362 = vst [vmem:[%s197 - $0x5] sm:$0x20] %v361
        %s363 = sand.u32 %s95, 1
        %s364 = scalar_lea.sflag [#allocation4], %s363
        %s365 = sand.u32 %s95, 1
        %s366 = scalar_lea.vmem [#allocation5], %s365
        // Predicated region
        $region33: #{tpu_custom_call.1} parent=27 // pred_check
          %p367 = pneg %p105
        $region34: #{tpu_custom_call.1} parent=27 // pred_check_branch
          %369 = sbr.rel (%p367) target = $region36
        $region35: #{tpu_custom_call.1} parent=27 // pred_region
          %371 = vsyncadd %s364, 0
          %s372 = sadd.s32 %s24, %s23
          %s373 = scalar_lea.hbm %s2, %s372
          %s375 = sshll.u32 %s366, 4
          %s376 = int_to_ptr.vmem [resolvable:$true] %s375
          %s377 = sshll.u32 %s373, 4
          %s378 = int_to_ptr.hbm [resolvable:$true] %s377
          %380 = dma.vmem_to_hbm [thread:$0]  %s376, 16, %s378, %s364
        $region36: #{tpu_custom_call.1} parent=27 // pred_fallthru
          _
      $region28: #{tpu_custom_call.1} parent=5 // pred_fallthru
        _
      %p381 = scmp.le.s32.totalorder 2, %s14
      // Predicated region
      $region37: #{tpu_custom_call.1} parent=5 // pred_check
        %p382 = pneg %p381
      $region38: #{tpu_custom_call.1} parent=5 // pred_check_branch
        %384 = sbr.rel (%p382) target = $region40
      $region39: #{tpu_custom_call.1} parent=5 // pred_region
        %s385 = ssub.s32 %s14, 2
        // Predicated region
        $region41: #{tpu_custom_call.1} parent=39 // pred_check
          %p386 = pneg %p111
        $region42: #{tpu_custom_call.1} parent=39 // pred_check_branch
          %388 = sbr.rel (%p386) target = $region44
        $region43: #{tpu_custom_call.1} parent=39 // pred_region
          %s389 = sand.u32 %s96, 1
          %s390 = scalar_lea.sflag [#allocation4], %s389
          %s391 = sand.u32 %s96, 1
          %s392 = scalar_lea.vmem [#allocation5], %s391
          %394 = dma.done %s390, 16
        $region44: #{tpu_custom_call.1} parent=39 // pred_fallthru
          _
      $region40: #{tpu_custom_call.1} parent=5 // pred_fallthru
        _
    $region6: #{tpu_custom_call.1} parent=1 // loop_footer
      %s18 = sadd.s32 1, %s14
    $region7: #{tpu_custom_call.1} parent=1 // loop_footer_branch
      %13 = sbr.rel target = $region3
    $region8: #{tpu_custom_call.1} parent=1 // loop_exit
      _
    %395 = vsyncpa [#allocation3], 1
    %s396 = scalar_lea.sflag [#allocation3], 1
    %397 = vsyncpa %s396, 1
    %398 = vsyncpa [#allocation4], 1
    %s399 = scalar_lea.sflag [#allocation4], 1
    %400 = vsyncpa %s399, 1

</llo_original>
